<compile_context>
chip_gen: v7x
topology: tpu7x:2x2x1
jax: 0.10.0
libtpu: 0.0.40
codegen_flags: <defaults>
</compile_context>

<pallas_src>
import jax
import jax.numpy as jnp
from jax.experimental import pallas as pl
from jax.experimental.pallas import tpu as pltpu

B = 8            # batch
T = 8            # sequence length
D = 32           # input_size
H = 64           # hidden_size
G = 3 * H        # 192: gates packed contiguously [r | z | n] (no padding lanes)
C = 10           # num_classes
CP = 128         # num_classes padded to a lane-dense output width


def gru_fc_kernel(x_ref, wih_ref, bih_ref, whh_ref, bhn_ref,
                  wfc_ref, bfc_ref, out_ref):
    # Hoisted input projection for ALL timesteps in one MXU matmul:
    #   (T*B, D) @ (D, 192) -> (T*B, 192), with (b_ih + [b_hr | b_hz | 0]) folded in.
    gi_all = (jnp.dot(x_ref[...], wih_ref[...],
                      preferred_element_type=jnp.float32) + bih_ref[...])

    # b_hn must stay inside the r*(...) term; broadcast it ONCE before the loop
    # (JAX does not CSE broadcast_in_dim, so doing it in-loop would emit T copies).
    bhn = jnp.broadcast_to(bhn_ref[...], (B, H))            # (B, 64)

    # Live hidden state only: (B, 64) -> recurrent matmul K = 64, N = 192.
    h = jnp.zeros((B, H), jnp.float32)

    # Serial recurrence, fully unrolled (T is tiny). PyTorch GRU gate order [r, z, n]:
    #   r = sigmoid(W_ir x + b_ir + W_hr h + b_hr)
    #   z = sigmoid(W_iz x + b_iz + W_hz h + b_hz)
    #   n = tanh(W_in x + b_in + r * (W_hn h + b_hn))
    #   h = (1 - z) * n + z * h
    for t in range(T):
        gi = gi_all[t * B:(t + 1) * B, :]                   # (B, 192), static row slice
        gh = jnp.dot(h, whh_ref[...],                       # read ref directly each step
                     preferred_element_type=jnp.float32)    # (B, 192)
        # r and z live in one 128-lane block -> single sigmoid over one (8,128) vreg.
        rz = jax.nn.sigmoid(gi[:, 0:2 * H] + gh[:, 0:2 * H])
        r = rz[:, 0:H]
        z = rz[:, H:2 * H]
        n = jnp.tanh(gi[:, 2 * H:G] + r * (gh[:, 2 * H:G] + bhn))
        h = n + z * (h - n)                                 # == (1 - z) * n + z * h

    # FC head + softmax on h_T. Padded logit lanes carry a -1e30 bias so exp() == 0
    # there; output stays a lane-dense (B, 128) store, sliced to (B, C) in the wrapper.
    logits = (jnp.dot(h, wfc_ref[...], preferred_element_type=jnp.float32)
              + bfc_ref[...])
    m = jnp.max(logits, axis=-1, keepdims=True)
    e = jnp.exp(logits - m)
    inv = pl.reciprocal(jnp.sum(e, axis=-1, keepdims=True), approx=True)
    out_ref[...] = e * inv


def gru_forward(x, packed):
    """x: (B, T, D) batch_first, matching the PyTorch module's forward."""
    wih_p, bih_p, whh_p, bhn_p, wfc_p, bfc_p = packed
    x2d = jnp.transpose(x, (1, 0, 2)).reshape(T * B, D)     # time-major, flattened rows

    vmem = lambda: pl.BlockSpec(memory_space=pltpu.MemorySpace.VMEM)
    out = pl.pallas_call(
        gru_fc_kernel,
        out_shape=jax.ShapeDtypeStruct((B, CP), jnp.float32),
        in_specs=[vmem() for _ in range(7)],
        out_specs=vmem(),
        cost_estimate=pl.CostEstimate(
            flops=2_500_000,          # input proj + 8 recurrent matmuls + FC head
            transcendentals=13_500,   # sigmoid/tanh per step + softmax exp
            bytes_accessed=121_000),  # ~0.12 MiB total working set
    )(x2d, wih_p, bih_p, whh_p, bhn_p, wfc_p, bfc_p)
    return out[:, :C]


def init_raw_params(key):
    """PyTorch-shaped parameters: weight_ih (3H, D), weight_hh (3H, H),
    bias_ih (3H,), bias_hh (3H,), fc weight (C, H), fc bias (C,)."""
    ks = jax.random.split(key, 6)
    scale = 0.1
    w_ih = scale * jax.random.normal(ks[0], (3 * H, D), jnp.float32)   # gates [r, z, n]
    w_hh = scale * jax.random.normal(ks[1], (3 * H, H), jnp.float32)
    b_ih = scale * jax.random.normal(ks[2], (3 * H,), jnp.float32)
    b_hh = scale * jax.random.normal(ks[3], (3 * H,), jnp.float32)
    w_fc = scale * jax.random.normal(ks[4], (C, H), jnp.float32)
    b_fc = scale * jax.random.normal(ks[5], (C,), jnp.float32)
    return w_ih, w_hh, b_ih, b_hh, w_fc, b_fc


def pack_params(raw):
    """Repack PyTorch-shaped params into the packed kernel layout."""
    w_ih, w_hh, b_ih, b_hh, w_fc, b_fc = raw

    wih_p = w_ih.T                                                     # (D, 192)
    whh_p = w_hh.T                                                     # (H, 192)
    # r/z hh-biases (and all ih-biases) fold into the hoisted input-projection bias.
    bih_p = (b_ih + jnp.concatenate(
        [b_hh[:2 * H], jnp.zeros((H,), jnp.float32)])).reshape(1, G)   # (1, 192)
    bhn_p = b_hh[2 * H:3 * H].reshape(1, H)                            # (1, 64)
    wfc_p = jnp.zeros((H, CP), jnp.float32).at[:, :C].set(w_fc.T)      # (H, 128)
    bfc_p = jnp.full((1, CP), -1e30, jnp.float32).at[0, :C].set(b_fc)  # (1, 128)
    return wih_p, bih_p, whh_p, bhn_p, wfc_p, bfc_p


def reference_forward(x, raw):
    """Pure-JAX reference mirroring torch.nn.GRU + Linear + softmax semantics,
    using the raw (PyTorch-shaped) parameters to cross-check the packing."""
    w_ih, w_hh, b_ih, b_hh, w_fc, b_fc = raw

    def step(h, x_t):
        gi = x_t @ w_ih.T + b_ih
        gh = h @ w_hh.T + b_hh
        r = jax.nn.sigmoid(gi[:, 0:H] + gh[:, 0:H])
        z = jax.nn.sigmoid(gi[:, H:2 * H] + gh[:, H:2 * H])
        n = jnp.tanh(gi[:, 2 * H:3 * H] + r * gh[:, 2 * H:3 * H])
        h = (1.0 - z) * n + z * h
        return h, None

    h0 = jnp.zeros((B, H), jnp.float32)
    h_T, _ = jax.lax.scan(step, h0, jnp.transpose(x, (1, 0, 2)))
    logits = h_T @ w_fc.T + b_fc
    return jax.nn.softmax(logits, axis=1)


if __name__ == "__main__":
    key = jax.random.PRNGKey(0)
    kx, kp = jax.random.split(key)
    x = jax.random.normal(kx, (B, T, D), jnp.float32)
    raw = init_raw_params(kp)
    packed = pack_params(raw)

    out = gru_forward(x, packed)
    out = jax.block_until_ready(out)

    ref = reference_forward(x, raw)
    assert out.shape == (B, C)
    # Tolerance accommodates the EUP approximate reciprocal in the softmax denominator.
    assert jnp.allclose(out, ref, atol=2e-3, rtol=2e-3), "mismatch vs reference"
    print("KERNEL_OK")
</pallas_src>

<mosaic_0001>
module attributes {stable_mosaic.version = 11 : i64} {
  func.func @gru_fc_kernel(%arg0: memref<64x32xf32, #tpu.memory_space<vmem>>, %arg1: memref<32x192xf32, #tpu.memory_space<vmem>>, %arg2: memref<1x192xf32, #tpu.memory_space<vmem>>, %arg3: memref<64x192xf32, #tpu.memory_space<vmem>>, %arg4: memref<1x64xf32, #tpu.memory_space<vmem>>, %arg5: memref<64x128xf32, #tpu.memory_space<vmem>>, %arg6: memref<1x128xf32, #tpu.memory_space<vmem>>, %arg7: memref<8x128xf32, #tpu.memory_space<vmem>>) attributes {dimension_semantics = [], scalar_prefetch = 0 : i64, scratch_operands = 0 : i64, tpu.core_type = #tpu.core_type<tc>} {
    %c0 = arith.constant 0 : index
    %c0_0 = arith.constant 0 : index
    %0 = vector.load %arg0[%c0, %c0_0] : memref<64x32xf32, #tpu.memory_space<vmem>>, vector<64x32xf32>
    %c0_1 = arith.constant 0 : index
    %c0_2 = arith.constant 0 : index
    %1 = vector.load %arg1[%c0_1, %c0_2] : memref<32x192xf32, #tpu.memory_space<vmem>>, vector<32x192xf32>
    %cst = arith.constant dense<0.000000e+00> : vector<64x192xf32>
    %2 = tpu.matmul %0, %1, %cst {dimension_numbers = #tpu.dot_dimension_numbers<[1], [0], [0], [1], [0, 0, 1, 1], [], []>} : vector<64x32xf32>, vector<32x192xf32>, vector<64x192xf32> -> vector<64x192xf32>
    %c0_3 = arith.constant 0 : index
    %c0_4 = arith.constant 0 : index
    %3 = vector.load %arg2[%c0_3, %c0_4] : memref<1x192xf32, #tpu.memory_space<vmem>>, vector<1x192xf32>
    %4 = vector.broadcast %3 : vector<1x192xf32> to vector<64x192xf32>
    %5 = arith.addf %2, %4 : vector<64x192xf32>
    %c0_5 = arith.constant 0 : index
    %c0_6 = arith.constant 0 : index
    %6 = vector.load %arg4[%c0_5, %c0_6] : memref<1x64xf32, #tpu.memory_space<vmem>>, vector<1x64xf32>
    %7 = vector.shape_cast %6 : vector<1x64xf32> to vector<1x64xf32>
    %8 = vector.broadcast %7 : vector<1x64xf32> to vector<8x64xf32>
    %cst_7 = arith.constant 0.000000e+00 : f32
    %9 = vector.broadcast %cst_7 : f32 to vector<8x64xf32>
    %10 = vector.extract_strided_slice %5 {offsets = [0, 0], sizes = [8, 192], strides = [1, 1]} : vector<64x192xf32> to vector<8x192xf32>
    %c0_8 = arith.constant 0 : index
    %c0_9 = arith.constant 0 : index
    %11 = vector.load %arg3[%c0_8, %c0_9] : memref<64x192xf32, #tpu.memory_space<vmem>>, vector<64x192xf32>
    %cst_10 = arith.constant dense<0.000000e+00> : vector<8x192xf32>
    %12 = tpu.matmul %9, %11, %cst_10 {dimension_numbers = #tpu.dot_dimension_numbers<[1], [0], [0], [1], [0, 0, 1, 1], [], []>} : vector<8x64xf32>, vector<64x192xf32>, vector<8x192xf32> -> vector<8x192xf32>
    %13 = vector.extract_strided_slice %10 {offsets = [0, 0], sizes = [8, 128], strides = [1, 1]} : vector<8x192xf32> to vector<8x128xf32>
    %14 = vector.extract_strided_slice %12 {offsets = [0, 0], sizes = [8, 128], strides = [1, 1]} : vector<8x192xf32> to vector<8x128xf32>
    %15 = arith.addf %13, %14 : vector<8x128xf32>
    %16 = arith.negf %15 : vector<8x128xf32>
    %17 = math.exp %16 : vector<8x128xf32>
    %cst_11 = arith.constant 1.000000e+00 : f32
    %18 = vector.broadcast %cst_11 : f32 to vector<8x128xf32>
    %19 = arith.addf %18, %17 : vector<8x128xf32>
    %20 = arith.divf %18, %19 : vector<8x128xf32>
    %21 = vector.extract_strided_slice %20 {offsets = [0, 0], sizes = [8, 64], strides = [1, 1]} : vector<8x128xf32> to vector<8x64xf32>
    %22 = vector.extract_strided_slice %20 {offsets = [0, 64], sizes = [8, 64], strides = [1, 1]} : vector<8x128xf32> to vector<8x64xf32>
    %23 = vector.extract_strided_slice %10 {offsets = [0, 128], sizes = [8, 64], strides = [1, 1]} : vector<8x192xf32> to vector<8x64xf32>
    %24 = vector.extract_strided_slice %12 {offsets = [0, 128], sizes = [8, 64], strides = [1, 1]} : vector<8x192xf32> to vector<8x64xf32>
    %25 = arith.addf %24, %8 : vector<8x64xf32>
    %26 = arith.mulf %21, %25 : vector<8x64xf32>
    %27 = arith.addf %23, %26 : vector<8x64xf32>
    %28 = math.tanh %27 : vector<8x64xf32>
    %29 = arith.subf %9, %28 : vector<8x64xf32>
    %30 = arith.mulf %22, %29 : vector<8x64xf32>
    %31 = arith.addf %28, %30 : vector<8x64xf32>
    %32 = vector.extract_strided_slice %5 {offsets = [8, 0], sizes = [8, 192], strides = [1, 1]} : vector<64x192xf32> to vector<8x192xf32>
    %c0_12 = arith.constant 0 : index
    %c0_13 = arith.constant 0 : index
    %33 = vector.load %arg3[%c0_12, %c0_13] : memref<64x192xf32, #tpu.memory_space<vmem>>, vector<64x192xf32>
    %cst_14 = arith.constant dense<0.000000e+00> : vector<8x192xf32>
    %34 = tpu.matmul %31, %33, %cst_14 {dimension_numbers = #tpu.dot_dimension_numbers<[1], [0], [0], [1], [0, 0, 1, 1], [], []>} : vector<8x64xf32>, vector<64x192xf32>, vector<8x192xf32> -> vector<8x192xf32>
    %35 = vector.extract_strided_slice %32 {offsets = [0, 0], sizes = [8, 128], strides = [1, 1]} : vector<8x192xf32> to vector<8x128xf32>
    %36 = vector.extract_strided_slice %34 {offsets = [0, 0], sizes = [8, 128], strides = [1, 1]} : vector<8x192xf32> to vector<8x128xf32>
    %37 = arith.addf %35, %36 : vector<8x128xf32>
    %38 = arith.negf %37 : vector<8x128xf32>
    %39 = math.exp %38 : vector<8x128xf32>
    %cst_15 = arith.constant 1.000000e+00 : f32
    %40 = vector.broadcast %cst_15 : f32 to vector<8x128xf32>
    %41 = arith.addf %40, %39 : vector<8x128xf32>
    %42 = arith.divf %40, %41 : vector<8x128xf32>
    %43 = vector.extract_strided_slice %42 {offsets = [0, 0], sizes = [8, 64], strides = [1, 1]} : vector<8x128xf32> to vector<8x64xf32>
    %44 = vector.extract_strided_slice %42 {offsets = [0, 64], sizes = [8, 64], strides = [1, 1]} : vector<8x128xf32> to vector<8x64xf32>
    %45 = vector.extract_strided_slice %32 {offsets = [0, 128], sizes = [8, 64], strides = [1, 1]} : vector<8x192xf32> to vector<8x64xf32>
    %46 = vector.extract_strided_slice %34 {offsets = [0, 128], sizes = [8, 64], strides = [1, 1]} : vector<8x192xf32> to vector<8x64xf32>
    %47 = arith.addf %46, %8 : vector<8x64xf32>
    %48 = arith.mulf %43, %47 : vector<8x64xf32>
    %49 = arith.addf %45, %48 : vector<8x64xf32>
    %50 = math.tanh %49 : vector<8x64xf32>
    %51 = arith.subf %31, %50 : vector<8x64xf32>
    %52 = arith.mulf %44, %51 : vector<8x64xf32>
    %53 = arith.addf %50, %52 : vector<8x64xf32>
    %54 = vector.extract_strided_slice %5 {offsets = [16, 0], sizes = [8, 192], strides = [1, 1]} : vector<64x192xf32> to vector<8x192xf32>
    %c0_16 = arith.constant 0 : index
    %c0_17 = arith.constant 0 : index
    %55 = vector.load %arg3[%c0_16, %c0_17] : memref<64x192xf32, #tpu.memory_space<vmem>>, vector<64x192xf32>
    %cst_18 = arith.constant dense<0.000000e+00> : vector<8x192xf32>
    %56 = tpu.matmul %53, %55, %cst_18 {dimension_numbers = #tpu.dot_dimension_numbers<[1], [0], [0], [1], [0, 0, 1, 1], [], []>} : vector<8x64xf32>, vector<64x192xf32>, vector<8x192xf32> -> vector<8x192xf32>
    %57 = vector.extract_strided_slice %54 {offsets = [0, 0], sizes = [8, 128], strides = [1, 1]} : vector<8x192xf32> to vector<8x128xf32>
    %58 = vector.extract_strided_slice %56 {offsets = [0, 0], sizes = [8, 128], strides = [1, 1]} : vector<8x192xf32> to vector<8x128xf32>
    %59 = arith.addf %57, %58 : vector<8x128xf32>
    %60 = arith.negf %59 : vector<8x128xf32>
    %61 = math.exp %60 : vector<8x128xf32>
    %cst_19 = arith.constant 1.000000e+00 : f32
    %62 = vector.broadcast %cst_19 : f32 to vector<8x128xf32>
    %63 = arith.addf %62, %61 : vector<8x128xf32>
    %64 = arith.divf %62, %63 : vector<8x128xf32>
    %65 = vector.extract_strided_slice %64 {offsets = [0, 0], sizes = [8, 64], strides = [1, 1]} : vector<8x128xf32> to vector<8x64xf32>
    %66 = vector.extract_strided_slice %64 {offsets = [0, 64], sizes = [8, 64], strides = [1, 1]} : vector<8x128xf32> to vector<8x64xf32>
    %67 = vector.extract_strided_slice %54 {offsets = [0, 128], sizes = [8, 64], strides = [1, 1]} : vector<8x192xf32> to vector<8x64xf32>
    %68 = vector.extract_strided_slice %56 {offsets = [0, 128], sizes = [8, 64], strides = [1, 1]} : vector<8x192xf32> to vector<8x64xf32>
    %69 = arith.addf %68, %8 : vector<8x64xf32>
    %70 = arith.mulf %65, %69 : vector<8x64xf32>
    %71 = arith.addf %67, %70 : vector<8x64xf32>
    %72 = math.tanh %71 : vector<8x64xf32>
    %73 = arith.subf %53, %72 : vector<8x64xf32>
    %74 = arith.mulf %66, %73 : vector<8x64xf32>
    %75 = arith.addf %72, %74 : vector<8x64xf32>
    %76 = vector.extract_strided_slice %5 {offsets = [24, 0], sizes = [8, 192], strides = [1, 1]} : vector<64x192xf32> to vector<8x192xf32>
    %c0_20 = arith.constant 0 : index
    %c0_21 = arith.constant 0 : index
    %77 = vector.load %arg3[%c0_20, %c0_21] : memref<64x192xf32, #tpu.memory_space<vmem>>, vector<64x192xf32>
    %cst_22 = arith.constant dense<0.000000e+00> : vector<8x192xf32>
    %78 = tpu.matmul %75, %77, %cst_22 {dimension_numbers = #tpu.dot_dimension_numbers<[1], [0], [0], [1], [0, 0, 1, 1], [], []>} : vector<8x64xf32>, vector<64x192xf32>, vector<8x192xf32> -> vector<8x192xf32>
    %79 = vector.extract_strided_slice %76 {offsets = [0, 0], sizes = [8, 128], strides = [1, 1]} : vector<8x192xf32> to vector<8x128xf32>
    %80 = vector.extract_strided_slice %78 {offsets = [0, 0], sizes = [8, 128], strides = [1, 1]} : vector<8x192xf32> to vector<8x128xf32>
    %81 = arith.addf %79, %80 : vector<8x128xf32>
    %82 = arith.negf %81 : vector<8x128xf32>
    %83 = math.exp %82 : vector<8x128xf32>
    %cst_23 = arith.constant 1.000000e+00 : f32
    %84 = vector.broadcast %cst_23 : f32 to vector<8x128xf32>
    %85 = arith.addf %84, %83 : vector<8x128xf32>
    %86 = arith.divf %84, %85 : vector<8x128xf32>
    %87 = vector.extract_strided_slice %86 {offsets = [0, 0], sizes = [8, 64], strides = [1, 1]} : vector<8x128xf32> to vector<8x64xf32>
    %88 = vector.extract_strided_slice %86 {offsets = [0, 64], sizes = [8, 64], strides = [1, 1]} : vector<8x128xf32> to vector<8x64xf32>
    %89 = vector.extract_strided_slice %76 {offsets = [0, 128], sizes = [8, 64], strides = [1, 1]} : vector<8x192xf32> to vector<8x64xf32>
    %90 = vector.extract_strided_slice %78 {offsets = [0, 128], sizes = [8, 64], strides = [1, 1]} : vector<8x192xf32> to vector<8x64xf32>
    %91 = arith.addf %90, %8 : vector<8x64xf32>
    %92 = arith.mulf %87, %91 : vector<8x64xf32>
    %93 = arith.addf %89, %92 : vector<8x64xf32>
    %94 = math.tanh %93 : vector<8x64xf32>
    %95 = arith.subf %75, %94 : vector<8x64xf32>
    %96 = arith.mulf %88, %95 : vector<8x64xf32>
    %97 = arith.addf %94, %96 : vector<8x64xf32>
    %98 = vector.extract_strided_slice %5 {offsets = [32, 0], sizes = [8, 192], strides = [1, 1]} : vector<64x192xf32> to vector<8x192xf32>
    %c0_24 = arith.constant 0 : index
    %c0_25 = arith.constant 0 : index
    %99 = vector.load %arg3[%c0_24, %c0_25] : memref<64x192xf32, #tpu.memory_space<vmem>>, vector<64x192xf32>
    %cst_26 = arith.constant dense<0.000000e+00> : vector<8x192xf32>
    %100 = tpu.matmul %97, %99, %cst_26 {dimension_numbers = #tpu.dot_dimension_numbers<[1], [0], [0], [1], [0, 0, 1, 1], [], []>} : vector<8x64xf32>, vector<64x192xf32>, vector<8x192xf32> -> vector<8x192xf32>
    %101 = vector.extract_strided_slice %98 {offsets = [0, 0], sizes = [8, 128], strides = [1, 1]} : vector<8x192xf32> to vector<8x128xf32>
    %102 = vector.extract_strided_slice %100 {offsets = [0, 0], sizes = [8, 128], strides = [1, 1]} : vector<8x192xf32> to vector<8x128xf32>
    %103 = arith.addf %101, %102 : vector<8x128xf32>
    %104 = arith.negf %103 : vector<8x128xf32>
    %105 = math.exp %104 : vector<8x128xf32>
    %cst_27 = arith.constant 1.000000e+00 : f32
    %106 = vector.broadcast %cst_27 : f32 to vector<8x128xf32>
    %107 = arith.addf %106, %105 : vector<8x128xf32>
    %108 = arith.divf %106, %107 : vector<8x128xf32>
    %109 = vector.extract_strided_slice %108 {offsets = [0, 0], sizes = [8, 64], strides = [1, 1]} : vector<8x128xf32> to vector<8x64xf32>
    %110 = vector.extract_strided_slice %108 {offsets = [0, 64], sizes = [8, 64], strides = [1, 1]} : vector<8x128xf32> to vector<8x64xf32>
    %111 = vector.extract_strided_slice %98 {offsets = [0, 128], sizes = [8, 64], strides = [1, 1]} : vector<8x192xf32> to vector<8x64xf32>
    %112 = vector.extract_strided_slice %100 {offsets = [0, 128], sizes = [8, 64], strides = [1, 1]} : vector<8x192xf32> to vector<8x64xf32>
    %113 = arith.addf %112, %8 : vector<8x64xf32>
    %114 = arith.mulf %109, %113 : vector<8x64xf32>
    %115 = arith.addf %111, %114 : vector<8x64xf32>
    %116 = math.tanh %115 : vector<8x64xf32>
    %117 = arith.subf %97, %116 : vector<8x64xf32>
    %118 = arith.mulf %110, %117 : vector<8x64xf32>
    %119 = arith.addf %116, %118 : vector<8x64xf32>
    %120 = vector.extract_strided_slice %5 {offsets = [40, 0], sizes = [8, 192], strides = [1, 1]} : vector<64x192xf32> to vector<8x192xf32>
    %c0_28 = arith.constant 0 : index
    %c0_29 = arith.constant 0 : index
    %121 = vector.load %arg3[%c0_28, %c0_29] : memref<64x192xf32, #tpu.memory_space<vmem>>, vector<64x192xf32>
    %cst_30 = arith.constant dense<0.000000e+00> : vector<8x192xf32>
    %122 = tpu.matmul %119, %121, %cst_30 {dimension_numbers = #tpu.dot_dimension_numbers<[1], [0], [0], [1], [0, 0, 1, 1], [], []>} : vector<8x64xf32>, vector<64x192xf32>, vector<8x192xf32> -> vector<8x192xf32>
    %123 = vector.extract_strided_slice %120 {offsets = [0, 0], sizes = [8, 128], strides = [1, 1]} : vector<8x192xf32> to vector<8x128xf32>
    %124 = vector.extract_strided_slice %122 {offsets = [0, 0], sizes = [8, 128], strides = [1, 1]} : vector<8x192xf32> to vector<8x128xf32>
    %125 = arith.addf %123, %124 : vector<8x128xf32>
    %126 = arith.negf %125 : vector<8x128xf32>
    %127 = math.exp %126 : vector<8x128xf32>
    %cst_31 = arith.constant 1.000000e+00 : f32
    %128 = vector.broadcast %cst_31 : f32 to vector<8x128xf32>
    %129 = arith.addf %128, %127 : vector<8x128xf32>
    %130 = arith.divf %128, %129 : vector<8x128xf32>
    %131 = vector.extract_strided_slice %130 {offsets = [0, 0], sizes = [8, 64], strides = [1, 1]} : vector<8x128xf32> to vector<8x64xf32>
    %132 = vector.extract_strided_slice %130 {offsets = [0, 64], sizes = [8, 64], strides = [1, 1]} : vector<8x128xf32> to vector<8x64xf32>
    %133 = vector.extract_strided_slice %120 {offsets = [0, 128], sizes = [8, 64], strides = [1, 1]} : vector<8x192xf32> to vector<8x64xf32>
    %134 = vector.extract_strided_slice %122 {offsets = [0, 128], sizes = [8, 64], strides = [1, 1]} : vector<8x192xf32> to vector<8x64xf32>
    %135 = arith.addf %134, %8 : vector<8x64xf32>
    %136 = arith.mulf %131, %135 : vector<8x64xf32>
    %137 = arith.addf %133, %136 : vector<8x64xf32>
    %138 = math.tanh %137 : vector<8x64xf32>
    %139 = arith.subf %119, %138 : vector<8x64xf32>
    %140 = arith.mulf %132, %139 : vector<8x64xf32>
    %141 = arith.addf %138, %140 : vector<8x64xf32>
    %142 = vector.extract_strided_slice %5 {offsets = [48, 0], sizes = [8, 192], strides = [1, 1]} : vector<64x192xf32> to vector<8x192xf32>
    %c0_32 = arith.constant 0 : index
    %c0_33 = arith.constant 0 : index
    %143 = vector.load %arg3[%c0_32, %c0_33] : memref<64x192xf32, #tpu.memory_space<vmem>>, vector<64x192xf32>
    %cst_34 = arith.constant dense<0.000000e+00> : vector<8x192xf32>
    %144 = tpu.matmul %141, %143, %cst_34 {dimension_numbers = #tpu.dot_dimension_numbers<[1], [0], [0], [1], [0, 0, 1, 1], [], []>} : vector<8x64xf32>, vector<64x192xf32>, vector<8x192xf32> -> vector<8x192xf32>
    %145 = vector.extract_strided_slice %142 {offsets = [0, 0], sizes = [8, 128], strides = [1, 1]} : vector<8x192xf32> to vector<8x128xf32>
    %146 = vector.extract_strided_slice %144 {offsets = [0, 0], sizes = [8, 128], strides = [1, 1]} : vector<8x192xf32> to vector<8x128xf32>
    %147 = arith.addf %145, %146 : vector<8x128xf32>
    %148 = arith.negf %147 : vector<8x128xf32>
    %149 = math.exp %148 : vector<8x128xf32>
    %cst_35 = arith.constant 1.000000e+00 : f32
    %150 = vector.broadcast %cst_35 : f32 to vector<8x128xf32>
    %151 = arith.addf %150, %149 : vector<8x128xf32>
    %152 = arith.divf %150, %151 : vector<8x128xf32>
    %153 = vector.extract_strided_slice %152 {offsets = [0, 0], sizes = [8, 64], strides = [1, 1]} : vector<8x128xf32> to vector<8x64xf32>
    %154 = vector.extract_strided_slice %152 {offsets = [0, 64], sizes = [8, 64], strides = [1, 1]} : vector<8x128xf32> to vector<8x64xf32>
    %155 = vector.extract_strided_slice %142 {offsets = [0, 128], sizes = [8, 64], strides = [1, 1]} : vector<8x192xf32> to vector<8x64xf32>
    %156 = vector.extract_strided_slice %144 {offsets = [0, 128], sizes = [8, 64], strides = [1, 1]} : vector<8x192xf32> to vector<8x64xf32>
    %157 = arith.addf %156, %8 : vector<8x64xf32>
    %158 = arith.mulf %153, %157 : vector<8x64xf32>
    %159 = arith.addf %155, %158 : vector<8x64xf32>
    %160 = math.tanh %159 : vector<8x64xf32>
    %161 = arith.subf %141, %160 : vector<8x64xf32>
    %162 = arith.mulf %154, %161 : vector<8x64xf32>
    %163 = arith.addf %160, %162 : vector<8x64xf32>
    %164 = vector.extract_strided_slice %5 {offsets = [56, 0], sizes = [8, 192], strides = [1, 1]} : vector<64x192xf32> to vector<8x192xf32>
    %c0_36 = arith.constant 0 : index
    %c0_37 = arith.constant 0 : index
    %165 = vector.load %arg3[%c0_36, %c0_37] : memref<64x192xf32, #tpu.memory_space<vmem>>, vector<64x192xf32>
    %cst_38 = arith.constant dense<0.000000e+00> : vector<8x192xf32>
    %166 = tpu.matmul %163, %165, %cst_38 {dimension_numbers = #tpu.dot_dimension_numbers<[1], [0], [0], [1], [0, 0, 1, 1], [], []>} : vector<8x64xf32>, vector<64x192xf32>, vector<8x192xf32> -> vector<8x192xf32>
    %167 = vector.extract_strided_slice %164 {offsets = [0, 0], sizes = [8, 128], strides = [1, 1]} : vector<8x192xf32> to vector<8x128xf32>
    %168 = vector.extract_strided_slice %166 {offsets = [0, 0], sizes = [8, 128], strides = [1, 1]} : vector<8x192xf32> to vector<8x128xf32>
    %169 = arith.addf %167, %168 : vector<8x128xf32>
    %170 = arith.negf %169 : vector<8x128xf32>
    %171 = math.exp %170 : vector<8x128xf32>
    %cst_39 = arith.constant 1.000000e+00 : f32
    %172 = vector.broadcast %cst_39 : f32 to vector<8x128xf32>
    %173 = arith.addf %172, %171 : vector<8x128xf32>
    %174 = arith.divf %172, %173 : vector<8x128xf32>
    %175 = vector.extract_strided_slice %174 {offsets = [0, 0], sizes = [8, 64], strides = [1, 1]} : vector<8x128xf32> to vector<8x64xf32>
    %176 = vector.extract_strided_slice %174 {offsets = [0, 64], sizes = [8, 64], strides = [1, 1]} : vector<8x128xf32> to vector<8x64xf32>
    %177 = vector.extract_strided_slice %164 {offsets = [0, 128], sizes = [8, 64], strides = [1, 1]} : vector<8x192xf32> to vector<8x64xf32>
    %178 = vector.extract_strided_slice %166 {offsets = [0, 128], sizes = [8, 64], strides = [1, 1]} : vector<8x192xf32> to vector<8x64xf32>
    %179 = arith.addf %178, %8 : vector<8x64xf32>
    %180 = arith.mulf %175, %179 : vector<8x64xf32>
    %181 = arith.addf %177, %180 : vector<8x64xf32>
    %182 = math.tanh %181 : vector<8x64xf32>
    %183 = arith.subf %163, %182 : vector<8x64xf32>
    %184 = arith.mulf %176, %183 : vector<8x64xf32>
    %185 = arith.addf %182, %184 : vector<8x64xf32>
    %c0_40 = arith.constant 0 : index
    %c0_41 = arith.constant 0 : index
    %186 = vector.load %arg5[%c0_40, %c0_41] : memref<64x128xf32, #tpu.memory_space<vmem>>, vector<64x128xf32>
    %cst_42 = arith.constant dense<0.000000e+00> : vector<8x128xf32>
    %187 = tpu.matmul %185, %186, %cst_42 {dimension_numbers = #tpu.dot_dimension_numbers<[1], [0], [0], [1], [0, 0, 1, 1], [], []>} : vector<8x64xf32>, vector<64x128xf32>, vector<8x128xf32> -> vector<8x128xf32>
    %c0_43 = arith.constant 0 : index
    %c0_44 = arith.constant 0 : index
    %188 = vector.load %arg6[%c0_43, %c0_44] : memref<1x128xf32, #tpu.memory_space<vmem>>, vector<1x128xf32>
    %189 = vector.broadcast %188 : vector<1x128xf32> to vector<8x128xf32>
    %190 = arith.addf %187, %189 : vector<8x128xf32>
    %cst_45 = arith.constant dense<0xFF800000> : vector<8xf32>
    %191 = vector.multi_reduction <maximumf>, %190, %cst_45 [1] : vector<8x128xf32> to vector<8xf32>
    %192 = vector.shape_cast %191 : vector<8xf32> to vector<8x1xf32>
    %193 = vector.broadcast %192 : vector<8x1xf32> to vector<8x128xf32>
    %194 = arith.subf %190, %193 : vector<8x128xf32>
    %195 = math.exp %194 : vector<8x128xf32>
    %cst_46 = arith.constant dense<0.000000e+00> : vector<8xf32>
    %196 = vector.multi_reduction <add>, %195, %cst_46 [1] : vector<8x128xf32> to vector<8xf32>
    %197 = vector.shape_cast %196 : vector<8xf32> to vector<8x1xf32>
    %198 = tpu.reciprocal %197 {approx = true} : vector<8x1xf32> -> vector<8x1xf32>
    %199 = vector.broadcast %198 : vector<8x1xf32> to vector<8x128xf32>
    %200 = arith.mulf %195, %199 : vector<8x128xf32>
    %c0_47 = arith.constant 0 : index
    %c0_48 = arith.constant 0 : index
    %201 = vector.load %arg7[%c0_47, %c0_48] : memref<8x128xf32, #tpu.memory_space<vmem>>, vector<8x128xf32>
    tpu.vector_store %arg7[%c0_47, %c0_48], %200 {strides = array<i32>} : memref<8x128xf32, #tpu.memory_space<vmem>>, vector<8x128xf32>,
    return
  }
}

</mosaic_0001>

<llo_original>
// kernel: tpu_custom_call.1
$region0: #{tpu_custom_call.1}
  #allocation0 [shape = 'u32[]', space=smem, size = 0x4, offset = 0x4, fixed_abs, tag = 'smem constant byte address 0x4 - core index']
  #allocation1 [shape = 'u32[144,128]{1,0:T(1,128)}', space=vmem, size = 0x12000, scoped, tag = 'internal scratch']
  %s0 = inlined_call_operand.vmem [shape: f32[64,32], index: 0, kind: input, shape index: {}]
  %s1 = inlined_call_operand.vmem [shape: f32[32,192], index: 1, kind: input, shape index: {}]
  %s2 = inlined_call_operand.vmem [shape: f32[1,192], index: 2, kind: input, shape index: {}]
  %s3 = inlined_call_operand.hbm [shape: f32[64,192], index: 3, kind: input, shape index: {}]
  %s4 = inlined_call_operand.vmem [shape: f32[1,64], index: 4, kind: input, shape index: {}]
  %s5 = inlined_call_operand.hbm [shape: f32[64,128], index: 5, kind: input, shape index: {}]
  %s6 = inlined_call_operand.vmem [shape: f32[1,128], index: 6, kind: input, shape index: {}]
  %s7 = inlined_call_operand.hbm [shape: f32[8,128], index: 7, kind: output, shape index: {}]
  %s8 = sld [smem:[#allocation0]]
  $region46: #{tpu_custom_call.1} parent=0
    _
  %s10 = ssub.s32 1, %s8
  %s11 = scalar_select 0, %s10, %s8
  $region1: #{tpu_custom_call.1} parent=0
    #allocation2 [shape = 'u8[65536]{0}', space=vmem, size = 0x10000, scoped, tag = 'input window, operand 3, single buffered']
    #allocation3 [shape = 's32[1]{0}', space=sflag, size = 0x4, scoped, tag = 'scoped memory for tpu_custom_call.1']
    #allocation4 [shape = 's32[1]{0}', space=sflag, size = 0x4, scoped, tag = 'scoped memory for tpu_custom_call.1']
    #allocation5 [shape = 'u8[32768]{0}', space=vmem, size = 0x8000, scoped, tag = 'input window, operand 5, single buffered']
    #allocation6 [shape = 's32[1]{0}', space=sflag, size = 0x4, scoped, tag = 'scoped memory for tpu_custom_call.1']
    #allocation7 [shape = 'u8[4096]{0}', space=vmem, size = 0x1000, scoped, tag = 'output window, operand 0, single buffered']
    %12 = vsyncpa [#allocation3], 0
    %13 = vsyncpa [#allocation6], 0
    %14 = vsyncpa [#allocation4], 0
    // Predicated region
    $region2: #{tpu_custom_call.1} parent=1 // pred_check
      _
    $region3: #{tpu_custom_call.1} parent=1 // pred_check_branch
      %16 = sbr.rel (0) target = $region5
    $region4: #{tpu_custom_call.1} parent=1 // pred_region
      _
    $region5: #{tpu_custom_call.1} parent=1 // pred_fallthru
      _
    // Predicated region
    $region6: #{tpu_custom_call.1} parent=1 // pred_check
      _
    $region7: #{tpu_custom_call.1} parent=1 // pred_check_branch
      %18 = sbr.rel (0) target = $region9
    $region8: #{tpu_custom_call.1} parent=1 // pred_region
      _
    $region9: #{tpu_custom_call.1} parent=1 // pred_fallthru
      _
    // Predicated region
    $region10: #{tpu_custom_call.1} parent=1 // pred_check
      _
    $region11: #{tpu_custom_call.1} parent=1 // pred_check_branch
      %20 = sbr.rel (0) target = $region13
    $region12: #{tpu_custom_call.1} parent=1 // pred_region
      _
    $region13: #{tpu_custom_call.1} parent=1 // pred_fallthru
      _
    // Predicated region
    $region14: #{tpu_custom_call.1} parent=1 // pred_check
      _
    $region15: #{tpu_custom_call.1} parent=1 // pred_check_branch
      %22 = sbr.rel (0) target = $region17
    $region16: #{tpu_custom_call.1} parent=1 // pred_region
      %s24 = ssub.s32 2048, 2048
      %25 = vsyncadd [#allocation3], %s24
      %s26 = sshll.u32 [#allocation2], 4
      %s27 = int_to_ptr.vmem [resolvable:$true] %s26
      %32 = dma.hbm_to_vmem [thread:$0]  %s3, 2048, %s27, [#allocation3], 256, 256, 16
    $region17: #{tpu_custom_call.1} parent=1 // pred_fallthru
      _
    // Predicated region
    $region18: #{tpu_custom_call.1} parent=1 // pred_check
      _
    $region19: #{tpu_custom_call.1} parent=1 // pred_check_branch
      %34 = sbr.rel (0) target = $region21
    $region20: #{tpu_custom_call.1} parent=1 // pred_region
      _
    $region21: #{tpu_custom_call.1} parent=1 // pred_fallthru
      _
    // Predicated region
    $region22: #{tpu_custom_call.1} parent=1 // pred_check
      _
    $region23: #{tpu_custom_call.1} parent=1 // pred_check_branch
      %36 = sbr.rel (0) target = $region25
    $region24: #{tpu_custom_call.1} parent=1 // pred_region
      %s38 = ssub.s32 1024, 1024
      %39 = vsyncadd [#allocation6], %s38
      %s40 = sshll.u32 [#allocation5], 4
      %s41 = int_to_ptr.vmem [resolvable:$true] %s40
      %46 = dma.hbm_to_vmem [thread:$0]  %s5, 1024, %s41, [#allocation6], 128, 128, 8
    $region25: #{tpu_custom_call.1} parent=1 // pred_fallthru
      _
    // Predicated region
    $region26: #{tpu_custom_call.1} parent=1 // pred_check
      _
    $region27: #{tpu_custom_call.1} parent=1 // pred_check_branch
      %48 = sbr.rel (0) target = $region29
    $region28: #{tpu_custom_call.1} parent=1 // pred_region
      _
    $region29: #{tpu_custom_call.1} parent=1 // pred_fallthru
      _
    // Predicated region
    $region30: #{tpu_custom_call.1} parent=1 // pred_check
      _
    $region31: #{tpu_custom_call.1} parent=1 // pred_check_branch
      %50 = sbr.rel (0) target = $region33
    $region32: #{tpu_custom_call.1} parent=1 // pred_region
      %51 = dma.done [#allocation3], 2048
    $region33: #{tpu_custom_call.1} parent=1 // pred_fallthru
      _
    // Predicated region
    $region34: #{tpu_custom_call.1} parent=1 // pred_check
      _
    $region35: #{tpu_custom_call.1} parent=1 // pred_check_branch
      %53 = sbr.rel (0) target = $region37
    $region36: #{tpu_custom_call.1} parent=1 // pred_region
      %54 = dma.done [#allocation6], 1024
    $region37: #{tpu_custom_call.1} parent=1 // pred_fallthru
      _
    %v55 = vld [vmem:[%s0] sm:$0xff]
    %v56 = vld [vmem:[%s0 + $0x8] sm:$0xff]
    %v57 = vld [vmem:[%s0 + $0x10] sm:$0xff]
    %v58 = vld [vmem:[%s0 + $0x18] sm:$0xff]
    %v59 = vld [vmem:[%s0 + $0x20] sm:$0xff]
    %v60 = vld [vmem:[%s0 + $0x28] sm:$0xff]
    %v61 = vld [vmem:[%s0 + $0x30] sm:$0xff]
    %v62 = vld [vmem:[%s0 + $0x38] sm:$0xff]
    %v63 = vld [vmem:[%s1] sm:$0xff]
    %v64 = vld [vmem:[%s1 + $0x8] sm:$0xff]
    %v65 = vld [vmem:[%s1 + $0x10] sm:$0xff]
    %v66 = vld [vmem:[%s1 + $0x18] sm:$0xff]
    %v67 = vld [vmem:[%s1 + $0x20] sm:$0xff]
    %v68 = vld [vmem:[%s1 + $0x28] sm:$0xff]
    %v69 = vld [vmem:[%s1 + $0x30] sm:$0xff]
    %v70 = vld [vmem:[%s1 + $0x38] sm:$0xff]
    %v71 = vld [vmem:[%s2] sm:$0x3]
    %v73 = vlaneseq
    %v74 = vshrl.u32 %v73, 7
    %v75 = vsub.s32 0, %v74
    %v76 = vrot.slane %v71, %v75
    %v77 = vlaneseq
    %v78 = vshrl.u32 %v77, 7
    %v79 = vsub.s32 1, %v78
    %v80 = vrot.slane %v71, %v79
    %vm83 = vcmask 261120
    %v85 = vsel %vm83, %v55, 0
    %v88 = vsel %vm83, %v56, 0
    %v91 = vsel %vm83, %v57, 0
    %v94 = vsel %vm83, %v58, 0
    %v97 = vsel %vm83, %v59, 0
    %v100 = vsel %vm83, %v60, 0
    %v103 = vsel %vm83, %v61, 0
    %v106 = vsel %vm83, %v62, 0
    %108 = vmatprep.subr.mxu0 %v64
    %109 = vmatpush1.msra.mxu0 %v63
    %110 = vmatprep.subr.mxu0 %v66
    %111 = vmatpush1.msra.mxu0 %v65
    %112 = vmatprep.subr.mxu0 %v68
    %113 = vmatpush1.msra.mxu0 %v67
    %114 = vmatprep.subr.mxu0 %v70
    %115 = vmatpush1.msra.mxu0 %v69
    %116 = vmatprep.subr.mxu0 0.0
    %117 = vmatpush1.msra.mxu0 0.0
    %118 = vmatprep.subr.mxu0 0.0
    %119 = vmatpush1.msra.mxu0 0.0
    %120 = vmatprep.subr.mxu0 0.0
    %121 = vmatpush1.msra.mxu0 0.0
    %122 = vmatprep.subr.mxu0 0.0
    %123 = vmatpush1.msra.mxu0 0.0
    %124 = vmatprep.subr.mxu0 0.0
    %125 = vmatpush1.msra.mxu0 0.0
    %126 = vmatprep.subr.mxu0 0.0
    %127 = vmatpush1.msra.mxu0 0.0
    %128 = vmatprep.subr.mxu0 0.0
    %129 = vmatpush1.msra.mxu0 0.0
    %130 = vmatprep.subr.mxu0 0.0
    %131 = vmatpush1.msra.mxu0 0.0
    %132 = vmatprep.subr.mxu0 0.0
    %133 = vmatpush1.msra.mxu0 0.0
    %134 = vmatprep.subr.mxu0 0.0
    %135 = vmatpush1.msra.mxu0 0.0
    %136 = vmatprep.subr.mxu0 0.0
    %137 = vmatpush1.msra.mxu0 0.0
    %138 = vmatprep.subr.mxu0 0.0
    %139 = vmatpush1.msra.mxu0 0.0
    %140 = vmatprep.subr.mxu0 0.0
    %141 = vmatpush1.msra.mxu0 0.0
    %142 = vmatprep.subr.mxu0 0.0
    %143 = vmatpush1.msra.mxu0 0.0
    %144 = vmatprep.subr.mxu0 0.0
    %145 = vmatpush1.msra.mxu0 0.0
    %146 = vmatprep.subr.mxu0 0.0
    %147 = vmatpush1.msra.mxu0 0.0
    %148 = vmatprep.subr.mxu0 0.0
    %149 = vmatpush1.msra.mxu0 0.0
    %150 = vmatprep.subr.mxu0 0.0
    %151 = vmatpush1.msra.mxu0 0.0
    %152 = vmatprep.subr.mxu0 0.0
    %153 = vmatpush1.msra.mxu0 0.0
    %154 = vmatprep.subr.mxu0 0.0
    %155 = vmatpush1.msra.mxu0 0.0
    %156 = vmatprep.subr.mxu0 0.0
    %157 = vmatpush1.msra.mxu0 0.0
    %158 = vmatprep.subr.mxu0 0.0
    %159 = vmatpush1.msra.mxu0 0.0
    %160 = vmatprep.subr.mxu0 0.0
    %161 = vmatpush1.msra.mxu0 0.0
    %162 = vmatprep.subr.mxu0 0.0
    %163 = vmatpush1.msra.mxu0 0.0
    %164 = vmatprep.subr.mxu0 0.0
    %165 = vmatpush1.msra.mxu0 0.0
    %166 = vmatprep.subr.mxu0 0.0
    %167 = vmatpush1.msra.mxu0 0.0
    %168 = vmatprep.subr.mxu0 0.0
    %169 = vmatpush1.msra.mxu0 0.0
    %170 = vmatprep.subr.mxu0 0.0
    %171 = vmatpush1.msra.mxu0 0.0
    %172 = vmatprep.mubr.f32.mxu0 0.0
    %173 = vmatmul.mubr.f32.gmra.mrb[0].mxu0 %v85
    %v174 = vpop.f32.mrb[0].mxu0
    %v175 = vadd.f32 %v76, %v174
    %v176 = vpop.f32.mrb[0].mxu0
    %v177 = vadd.f32 %v80, %v176
    %178 = vmatprep.mubr.f32.mxu0 0.0
    %179 = vmatmul.mubr.f32.gmra.mrb[0].mxu0 %v88
    %v180 = vpop.f32.mrb[0].mxu0
    %v181 = vadd.f32 %v76, %v180
    %v182 = vpop.f32.mrb[0].mxu0
    %v183 = vadd.f32 %v80, %v182
    %184 = vmatprep.mubr.f32.mxu0 0.0
    %185 = vmatmul.mubr.f32.gmra.mrb[0].mxu0 %v91
    %v186 = vpop.f32.mrb[0].mxu0
    %v187 = vadd.f32 %v76, %v186
    %v188 = vpop.f32.mrb[0].mxu0
    %v189 = vadd.f32 %v80, %v188
    %190 = vmatprep.mubr.f32.mxu0 0.0
    %191 = vmatmul.mubr.f32.gmra.mrb[0].mxu0 %v94
    %v192 = vpop.f32.mrb[0].mxu0
    %v193 = vadd.f32 %v76, %v192
    %v194 = vpop.f32.mrb[0].mxu0
    %v195 = vadd.f32 %v80, %v194
    %196 = vmatprep.mubr.f32.mxu0 0.0
    %197 = vmatmul.mubr.f32.gmra.mrb[0].mxu0 %v97
    %v198 = vpop.f32.mrb[0].mxu0
    %v199 = vadd.f32 %v76, %v198
    %v200 = vpop.f32.mrb[0].mxu0
    %v201 = vadd.f32 %v80, %v200
    %202 = vmatprep.mubr.f32.mxu0 0.0
    %203 = vmatmul.mubr.f32.gmra.mrb[0].mxu0 %v100
    %v204 = vpop.f32.mrb[0].mxu0
    %v205 = vadd.f32 %v76, %v204
    %v206 = vpop.f32.mrb[0].mxu0
    %v207 = vadd.f32 %v80, %v206
    %208 = vmatprep.mubr.f32.mxu0 0.0
    %209 = vmatmul.mubr.f32.gmra.mrb[0].mxu0 %v103
    %v210 = vpop.f32.mrb[0].mxu0
    %v211 = vadd.f32 %v76, %v210
    %v212 = vpop.f32.mrb[0].mxu0
    %v213 = vadd.f32 %v80, %v212
    %214 = vmatprep.mubr.f32.mxu0 0.0
    %215 = vmatmul.mubr.f32.gmra.mrb[0].mxu0 %v106
    %v216 = vpop.f32.mrb[0].mxu0
    %v217 = vadd.f32 %v76, %v216
    %v218 = vpop.f32.mrb[0].mxu0
    %v219 = vadd.f32 %v80, %v218
    %220 = vdwg.mxu0
    %v221 = vld [vmem:[%s4] sm:$0x1]
    %v223 = vlaneseq
    %v224 = vshrl.u32 %v223, 7
    %v225 = vsub.s32 0, %v224
    %v226 = vrot.slane %v221, %v225
    %v228 = vld [vmem:[#allocation2] sm:$0xff]
    %v229 = vld [vmem:[#allocation2 + $0x8] sm:$0xff]
    %v230 = vld [vmem:[#allocation2 + $0x10] sm:$0xff]
    %v231 = vld [vmem:[#allocation2 + $0x18] sm:$0xff]
    %v232 = vld [vmem:[#allocation2 + $0x20] sm:$0xff]
    %v233 = vld [vmem:[#allocation2 + $0x28] sm:$0xff]
    %v234 = vld [vmem:[#allocation2 + $0x30] sm:$0xff]
    %v235 = vld [vmem:[#allocation2 + $0x38] sm:$0xff]
    %v236 = vld [vmem:[#allocation2 + $0x40] sm:$0xff]
    %v237 = vld [vmem:[#allocation2 + $0x48] sm:$0xff]
    %v238 = vld [vmem:[#allocation2 + $0x50] sm:$0xff]
    %v239 = vld [vmem:[#allocation2 + $0x58] sm:$0xff]
    %v240 = vld [vmem:[#allocation2 + $0x60] sm:$0xff]
    %v241 = vld [vmem:[#allocation2 + $0x68] sm:$0xff]
    %v242 = vld [vmem:[#allocation2 + $0x70] sm:$0xff]
    %v243 = vld [vmem:[#allocation2 + $0x78] sm:$0xff]
    %vm244 = vcmask 523264
    %v246 = vsel %vm244, 0.0, 0
    %248 = vmatprep.subr.mxu0 %v229
    %249 = vmatpush1.msra.mxu0 %v228
    %250 = vmatprep.subr.mxu0 %v231
    %251 = vmatpush1.msra.mxu0 %v230
    %252 = vmatprep.subr.mxu0 %v233
    %253 = vmatpush1.msra.mxu0 %v232
    %254 = vmatprep.subr.mxu0 %v235
    %255 = vmatpush1.msra.mxu0 %v234
    %256 = vmatprep.subr.mxu0 %v237
    %257 = vmatpush1.msra.mxu0 %v236
    %258 = vmatprep.subr.mxu0 %v239
    %259 = vmatpush1.msra.mxu0 %v238
    %260 = vmatprep.subr.mxu0 %v241
    %261 = vmatpush1.msra.mxu0 %v240
    %262 = vmatprep.subr.mxu0 %v243
    %263 = vmatpush1.msra.mxu0 %v242
    %264 = vmatprep.subr.mxu0 0.0
    %265 = vmatpush1.msra.mxu0 0.0
    %266 = vmatprep.subr.mxu0 0.0
    %267 = vmatpush1.msra.mxu0 0.0
    %268 = vmatprep.subr.mxu0 0.0
    %269 = vmatpush1.msra.mxu0 0.0
    %270 = vmatprep.subr.mxu0 0.0
    %271 = vmatpush1.msra.mxu0 0.0
    %272 = vmatprep.subr.mxu0 0.0
    %273 = vmatpush1.msra.mxu0 0.0
    %274 = vmatprep.subr.mxu0 0.0
    %275 = vmatpush1.msra.mxu0 0.0
    %276 = vmatprep.subr.mxu0 0.0
    %277 = vmatpush1.msra.mxu0 0.0
    %278 = vmatprep.subr.mxu0 0.0
    %279 = vmatpush1.msra.mxu0 0.0
    %280 = vmatprep.subr.mxu0 0.0
    %281 = vmatpush1.msra.mxu0 0.0
    %282 = vmatprep.subr.mxu0 0.0
    %283 = vmatpush1.msra.mxu0 0.0
    %284 = vmatprep.subr.mxu0 0.0
    %285 = vmatpush1.msra.mxu0 0.0
    %286 = vmatprep.subr.mxu0 0.0
    %287 = vmatpush1.msra.mxu0 0.0
    %288 = vmatprep.subr.mxu0 0.0
    %289 = vmatpush1.msra.mxu0 0.0
    %290 = vmatprep.subr.mxu0 0.0
    %291 = vmatpush1.msra.mxu0 0.0
    %292 = vmatprep.subr.mxu0 0.0
    %293 = vmatpush1.msra.mxu0 0.0
    %294 = vmatprep.subr.mxu0 0.0
    %295 = vmatpush1.msra.mxu0 0.0
    %296 = vmatprep.subr.mxu0 0.0
    %297 = vmatpush1.msra.mxu0 0.0
    %298 = vmatprep.subr.mxu0 0.0
    %299 = vmatpush1.msra.mxu0 0.0
    %300 = vmatprep.subr.mxu0 0.0
    %301 = vmatpush1.msra.mxu0 0.0
    %302 = vmatprep.subr.mxu0 0.0
    %303 = vmatpush1.msra.mxu0 0.0
    %304 = vmatprep.subr.mxu0 0.0
    %305 = vmatpush1.msra.mxu0 0.0
    %306 = vmatprep.subr.mxu0 0.0
    %307 = vmatpush1.msra.mxu0 0.0
    %308 = vmatprep.subr.mxu0 0.0
    %309 = vmatpush1.msra.mxu0 0.0
    %310 = vmatprep.subr.mxu0 0.0
    %311 = vmatpush1.msra.mxu0 0.0
    %312 = vmatprep.mubr.f32.mxu0 0.0
    %313 = vmatmul.mubr.f32.gmra.mrb[0].mxu0 %v246
    %v314 = vpop.f32.mrb[0].mxu0
    %v315 = vadd.f32 0.0, %v314
    %v316 = vpop.f32.mrb[0].mxu0
    %v317 = vadd.f32 0.0, %v316
    %318 = vdwg.mxu0
    %v319 = vadd.f32 %v175, %v315
    %v320 = vxor.u32 %v319, 2147483648
    %v321 = vmul.f32 %v320, 1.442695
    %v322 = vpow.pop %v321
    %v323 = vadd.f32 %v322, 1.0
    %v324 = vrcp.pop %v323
    %v325 = vmul.f32 1.0, %v324
    %v326 = vadd.f32 %v317, %v226
    %v327 = vmul.f32 %v325, %v326
    %v328 = vadd.f32 %v177, %v327
    %v329 = vtanh.pop %v328
    %v330 = vsub.f32 0.0, %v329
    %332 = vrot.lane.b32.xlu0 %v330, 64
    %v333 = vpop.permute.xlu0 %332
    %v335 = vmul.f32 %v325, %v333
    %337 = vrot.lane.b32.xlu0 %v335, 64
    %v338 = vpop.permute.xlu0 %337
    %v340 = vadd.f32 %v329, %v338
    %v342 = vsel %vm244, %v340, 0
    %344 = vmatprep.subr.mxu0 %v229
    %345 = vmatpush1.msra.mxu0 %v228
    %346 = vmatprep.subr.mxu0 %v231
    %347 = vmatpush1.msra.mxu0 %v230
    %348 = vmatprep.subr.mxu0 %v233
    %349 = vmatpush1.msra.mxu0 %v232
    %350 = vmatprep.subr.mxu0 %v235
    %351 = vmatpush1.msra.mxu0 %v234
    %352 = vmatprep.subr.mxu0 %v237
    %353 = vmatpush1.msra.mxu0 %v236
    %354 = vmatprep.subr.mxu0 %v239
    %355 = vmatpush1.msra.mxu0 %v238
    %356 = vmatprep.subr.mxu0 %v241
    %357 = vmatpush1.msra.mxu0 %v240
    %358 = vmatprep.subr.mxu0 %v243
    %359 = vmatpush1.msra.mxu0 %v242
    %360 = vmatprep.subr.mxu0 0.0
    %361 = vmatpush1.msra.mxu0 0.0
    %362 = vmatprep.subr.mxu0 0.0
    %363 = vmatpush1.msra.mxu0 0.0
    %364 = vmatprep.subr.mxu0 0.0
    %365 = vmatpush1.msra.mxu0 0.0
    %366 = vmatprep.subr.mxu0 0.0
    %367 = vmatpush1.msra.mxu0 0.0
    %368 = vmatprep.subr.mxu0 0.0
    %369 = vmatpush1.msra.mxu0 0.0
    %370 = vmatprep.subr.mxu0 0.0
    %371 = vmatpush1.msra.mxu0 0.0
    %372 = vmatprep.subr.mxu0 0.0
    %373 = vmatpush1.msra.mxu0 0.0
    %374 = vmatprep.subr.mxu0 0.0
    %375 = vmatpush1.msra.mxu0 0.0
    %376 = vmatprep.subr.mxu0 0.0
    %377 = vmatpush1.msra.mxu0 0.0
    %378 = vmatprep.subr.mxu0 0.0
    %379 = vmatpush1.msra.mxu0 0.0
    %380 = vmatprep.subr.mxu0 0.0
    %381 = vmatpush1.msra.mxu0 0.0
    %382 = vmatprep.subr.mxu0 0.0
    %383 = vmatpush1.msra.mxu0 0.0
    %384 = vmatprep.subr.mxu0 0.0
    %385 = vmatpush1.msra.mxu0 0.0
    %386 = vmatprep.subr.mxu0 0.0
    %387 = vmatpush1.msra.mxu0 0.0
    %388 = vmatprep.subr.mxu0 0.0
    %389 = vmatpush1.msra.mxu0 0.0
    %390 = vmatprep.subr.mxu0 0.0
    %391 = vmatpush1.msra.mxu0 0.0
    %392 = vmatprep.subr.mxu0 0.0
    %393 = vmatpush1.msra.mxu0 0.0
    %394 = vmatprep.subr.mxu0 0.0
    %395 = vmatpush1.msra.mxu0 0.0
    %396 = vmatprep.subr.mxu0 0.0
    %397 = vmatpush1.msra.mxu0 0.0
    %398 = vmatprep.subr.mxu0 0.0
    %399 = vmatpush1.msra.mxu0 0.0
    %400 = vmatprep.subr.mxu0 0.0
    %401 = vmatpush1.msra.mxu0 0.0
    %402 = vmatprep.subr.mxu0 0.0
    %403 = vmatpush1.msra.mxu0 0.0
    %404 = vmatprep.subr.mxu0 0.0
    %405 = vmatpush1.msra.mxu0 0.0
    %406 = vmatprep.subr.mxu0 0.0
    %407 = vmatpush1.msra.mxu0 0.0
    %408 = vmatprep.mubr.f32.mxu0 0.0
    %409 = vmatmul.mubr.f32.gmra.mrb[0].mxu0 %v342
    %v410 = vpop.f32.mrb[0].mxu0
    %v411 = vadd.f32 0.0, %v410
    %v412 = vpop.f32.mrb[0].mxu0
    %v413 = vadd.f32 0.0, %v412
    %414 = vdwg.mxu0
    %v415 = vadd.f32 %v181, %v411
    %v416 = vxor.u32 %v415, 2147483648
    %v417 = vmul.f32 %v416, 1.442695
    %v418 = vpow.pop %v417
    %v419 = vadd.f32 %v418, 1.0
    %v420 = vrcp.pop %v419
    %v421 = vmul.f32 1.0, %v420
    %v422 = vadd.f32 %v413, %v226
    %v423 = vmul.f32 %v421, %v422
    %v424 = vadd.f32 %v183, %v423
    %v425 = vtanh.pop %v424
    %v426 = vsub.f32 %v340, %v425
    %428 = vrot.lane.b32.xlu0 %v426, 64
    %v429 = vpop.permute.xlu0 %428
    %v431 = vmul.f32 %v421, %v429
    %433 = vrot.lane.b32.xlu0 %v431, 64
    %v434 = vpop.permute.xlu0 %433
    %v436 = vadd.f32 %v425, %v434
    %v438 = vsel %vm244, %v436, 0
    %440 = vmatprep.subr.mxu0 %v229
    %441 = vmatpush1.msra.mxu0 %v228
    %442 = vmatprep.subr.mxu0 %v231
    %443 = vmatpush1.msra.mxu0 %v230
    %444 = vmatprep.subr.mxu0 %v233
    %445 = vmatpush1.msra.mxu0 %v232
    %446 = vmatprep.subr.mxu0 %v235
    %447 = vmatpush1.msra.mxu0 %v234
    %448 = vmatprep.subr.mxu0 %v237
    %449 = vmatpush1.msra.mxu0 %v236
    %450 = vmatprep.subr.mxu0 %v239
    %451 = vmatpush1.msra.mxu0 %v238
    %452 = vmatprep.subr.mxu0 %v241
    %453 = vmatpush1.msra.mxu0 %v240
    %454 = vmatprep.subr.mxu0 %v243
    %455 = vmatpush1.msra.mxu0 %v242
    %456 = vmatprep.subr.mxu0 0.0
    %457 = vmatpush1.msra.mxu0 0.0
    %458 = vmatprep.subr.mxu0 0.0
    %459 = vmatpush1.msra.mxu0 0.0
    %460 = vmatprep.subr.mxu0 0.0
    %461 = vmatpush1.msra.mxu0 0.0
    %462 = vmatprep.subr.mxu0 0.0
    %463 = vmatpush1.msra.mxu0 0.0
    %464 = vmatprep.subr.mxu0 0.0
    %465 = vmatpush1.msra.mxu0 0.0
    %466 = vmatprep.subr.mxu0 0.0
    %467 = vmatpush1.msra.mxu0 0.0
    %468 = vmatprep.subr.mxu0 0.0
    %469 = vmatpush1.msra.mxu0 0.0
    %470 = vmatprep.subr.mxu0 0.0
    %471 = vmatpush1.msra.mxu0 0.0
    %472 = vmatprep.subr.mxu0 0.0
    %473 = vmatpush1.msra.mxu0 0.0
    %474 = vmatprep.subr.mxu0 0.0
    %475 = vmatpush1.msra.mxu0 0.0
    %476 = vmatprep.subr.mxu0 0.0
    %477 = vmatpush1.msra.mxu0 0.0
    %478 = vmatprep.subr.mxu0 0.0
    %479 = vmatpush1.msra.mxu0 0.0
    %480 = vmatprep.subr.mxu0 0.0
    %481 = vmatpush1.msra.mxu0 0.0
    %482 = vmatprep.subr.mxu0 0.0
    %483 = vmatpush1.msra.mxu0 0.0
    %484 = vmatprep.subr.mxu0 0.0
    %485 = vmatpush1.msra.mxu0 0.0
    %486 = vmatprep.subr.mxu0 0.0
    %487 = vmatpush1.msra.mxu0 0.0
    %488 = vmatprep.subr.mxu0 0.0
    %489 = vmatpush1.msra.mxu0 0.0
    %490 = vmatprep.subr.mxu0 0.0
    %491 = vmatpush1.msra.mxu0 0.0
    %492 = vmatprep.subr.mxu0 0.0
    %493 = vmatpush1.msra.mxu0 0.0
    %494 = vmatprep.subr.mxu0 0.0
    %495 = vmatpush1.msra.mxu0 0.0
    %496 = vmatprep.subr.mxu0 0.0
    %497 = vmatpush1.msra.mxu0 0.0
    %498 = vmatprep.subr.mxu0 0.0
    %499 = vmatpush1.msra.mxu0 0.0
    %500 = vmatprep.subr.mxu0 0.0
    %501 = vmatpush1.msra.mxu0 0.0
    %502 = vmatprep.subr.mxu0 0.0
    %503 = vmatpush1.msra.mxu0 0.0
    %504 = vmatprep.mubr.f32.mxu0 0.0
    %505 = vmatmul.mubr.f32.gmra.mrb[0].mxu0 %v438
    %v506 = vpop.f32.mrb[0].mxu0
    %v507 = vadd.f32 0.0, %v506
    %v508 = vpop.f32.mrb[0].mxu0
    %v509 = vadd.f32 0.0, %v508
    %510 = vdwg.mxu0
    %v511 = vadd.f32 %v187, %v507
    %v512 = vxor.u32 %v511, 2147483648
    %v513 = vmul.f32 %v512, 1.442695
    %v514 = vpow.pop %v513
    %v515 = vadd.f32 %v514, 1.0
    %v516 = vrcp.pop %v515
    %v517 = vmul.f32 1.0, %v516
    %v518 = vadd.f32 %v509, %v226
    %v519 = vmul.f32 %v517, %v518
    %v520 = vadd.f32 %v189, %v519
    %v521 = vtanh.pop %v520
    %v522 = vsub.f32 %v436, %v521
    %524 = vrot.lane.b32.xlu0 %v522, 64
    %v525 = vpop.permute.xlu0 %524
    %v527 = vmul.f32 %v517, %v525
    %529 = vrot.lane.b32.xlu0 %v527, 64
    %v530 = vpop.permute.xlu0 %529
    %v532 = vadd.f32 %v521, %v530
    %v534 = vsel %vm244, %v532, 0
    %536 = vmatprep.subr.mxu0 %v229
    %537 = vmatpush1.msra.mxu0 %v228
    %538 = vmatprep.subr.mxu0 %v231
    %539 = vmatpush1.msra.mxu0 %v230
    %540 = vmatprep.subr.mxu0 %v233
    %541 = vmatpush1.msra.mxu0 %v232
    %542 = vmatprep.subr.mxu0 %v235
    %543 = vmatpush1.msra.mxu0 %v234
    %544 = vmatprep.subr.mxu0 %v237
    %545 = vmatpush1.msra.mxu0 %v236
    %546 = vmatprep.subr.mxu0 %v239
    %547 = vmatpush1.msra.mxu0 %v238
    %548 = vmatprep.subr.mxu0 %v241
    %549 = vmatpush1.msra.mxu0 %v240
    %550 = vmatprep.subr.mxu0 %v243
    %551 = vmatpush1.msra.mxu0 %v242
    %552 = vmatprep.subr.mxu0 0.0
    %553 = vmatpush1.msra.mxu0 0.0
    %554 = vmatprep.subr.mxu0 0.0
    %555 = vmatpush1.msra.mxu0 0.0
    %556 = vmatprep.subr.mxu0 0.0
    %557 = vmatpush1.msra.mxu0 0.0
    %558 = vmatprep.subr.mxu0 0.0
    %559 = vmatpush1.msra.mxu0 0.0
    %560 = vmatprep.subr.mxu0 0.0
    %561 = vmatpush1.msra.mxu0 0.0
    %562 = vmatprep.subr.mxu0 0.0
    %563 = vmatpush1.msra.mxu0 0.0
    %564 = vmatprep.subr.mxu0 0.0
    %565 = vmatpush1.msra.mxu0 0.0
    %566 = vmatprep.subr.mxu0 0.0
    %567 = vmatpush1.msra.mxu0 0.0
    %568 = vmatprep.subr.mxu0 0.0
    %569 = vmatpush1.msra.mxu0 0.0
    %570 = vmatprep.subr.mxu0 0.0
    %571 = vmatpush1.msra.mxu0 0.0
    %572 = vmatprep.subr.mxu0 0.0
    %573 = vmatpush1.msra.mxu0 0.0
    %574 = vmatprep.subr.mxu0 0.0
    %575 = vmatpush1.msra.mxu0 0.0
    %576 = vmatprep.subr.mxu0 0.0
    %577 = vmatpush1.msra.mxu0 0.0
    %578 = vmatprep.subr.mxu0 0.0
    %579 = vmatpush1.msra.mxu0 0.0
    %580 = vmatprep.subr.mxu0 0.0
    %581 = vmatpush1.msra.mxu0 0.0
    %582 = vmatprep.subr.mxu0 0.0
    %583 = vmatpush1.msra.mxu0 0.0
    %584 = vmatprep.subr.mxu0 0.0
    %585 = vmatpush1.msra.mxu0 0.0
    %586 = vmatprep.subr.mxu0 0.0
    %587 = vmatpush1.msra.mxu0 0.0
    %588 = vmatprep.subr.mxu0 0.0
    %589 = vmatpush1.msra.mxu0 0.0
    %590 = vmatprep.subr.mxu0 0.0
    %591 = vmatpush1.msra.mxu0 0.0
    %592 = vmatprep.subr.mxu0 0.0
    %593 = vmatpush1.msra.mxu0 0.0
    %594 = vmatprep.subr.mxu0 0.0
    %595 = vmatpush1.msra.mxu0 0.0
    %596 = vmatprep.subr.mxu0 0.0
    %597 = vmatpush1.msra.mxu0 0.0
    %598 = vmatprep.subr.mxu0 0.0
    %599 = vmatpush1.msra.mxu0 0.0
    %600 = vmatprep.mubr.f32.mxu0 0.0
    %601 = vmatmul.mubr.f32.gmra.mrb[0].mxu0 %v534
    %v602 = vpop.f32.mrb[0].mxu0
    %v603 = vadd.f32 0.0, %v602
    %v604 = vpop.f32.mrb[0].mxu0
    %v605 = vadd.f32 0.0, %v604
    %606 = vdwg.mxu0
    %v607 = vadd.f32 %v193, %v603
    %v608 = vxor.u32 %v607, 2147483648
    %v609 = vmul.f32 %v608, 1.442695
    %v610 = vpow.pop %v609
    %v611 = vadd.f32 %v610, 1.0
    %v612 = vrcp.pop %v611
    %v613 = vmul.f32 1.0, %v612
    %v614 = vadd.f32 %v605, %v226
    %v615 = vmul.f32 %v613, %v614
    %v616 = vadd.f32 %v195, %v615
    %v617 = vtanh.pop %v616
    %v618 = vsub.f32 %v532, %v617
    %620 = vrot.lane.b32.xlu0 %v618, 64
    %v621 = vpop.permute.xlu0 %620
    %v623 = vmul.f32 %v613, %v621
    %625 = vrot.lane.b32.xlu0 %v623, 64
    %v626 = vpop.permute.xlu0 %625
    %v628 = vadd.f32 %v617, %v626
    %v630 = vsel %vm244, %v628, 0
    %632 = vmatprep.subr.mxu0 %v229
    %633 = vmatpush1.msra.mxu0 %v228
    %634 = vmatprep.subr.mxu0 %v231
    %635 = vmatpush1.msra.mxu0 %v230
    %636 = vmatprep.subr.mxu0 %v233
    %637 = vmatpush1.msra.mxu0 %v232
    %638 = vmatprep.subr.mxu0 %v235
    %639 = vmatpush1.msra.mxu0 %v234
    %640 = vmatprep.subr.mxu0 %v237
    %641 = vmatpush1.msra.mxu0 %v236
    %642 = vmatprep.subr.mxu0 %v239
    %643 = vmatpush1.msra.mxu0 %v238
    %644 = vmatprep.subr.mxu0 %v241
    %645 = vmatpush1.msra.mxu0 %v240
    %646 = vmatprep.subr.mxu0 %v243
    %647 = vmatpush1.msra.mxu0 %v242
    %648 = vmatprep.subr.mxu0 0.0
    %649 = vmatpush1.msra.mxu0 0.0
    %650 = vmatprep.subr.mxu0 0.0
    %651 = vmatpush1.msra.mxu0 0.0
    %652 = vmatprep.subr.mxu0 0.0
    %653 = vmatpush1.msra.mxu0 0.0
    %654 = vmatprep.subr.mxu0 0.0
    %655 = vmatpush1.msra.mxu0 0.0
    %656 = vmatprep.subr.mxu0 0.0
    %657 = vmatpush1.msra.mxu0 0.0
    %658 = vmatprep.subr.mxu0 0.0
    %659 = vmatpush1.msra.mxu0 0.0
    %660 = vmatprep.subr.mxu0 0.0
    %661 = vmatpush1.msra.mxu0 0.0
    %662 = vmatprep.subr.mxu0 0.0
    %663 = vmatpush1.msra.mxu0 0.0
    %664 = vmatprep.subr.mxu0 0.0
    %665 = vmatpush1.msra.mxu0 0.0
    %666 = vmatprep.subr.mxu0 0.0
    %667 = vmatpush1.msra.mxu0 0.0
    %668 = vmatprep.subr.mxu0 0.0
    %669 = vmatpush1.msra.mxu0 0.0
    %670 = vmatprep.subr.mxu0 0.0
    %671 = vmatpush1.msra.mxu0 0.0
    %672 = vmatprep.subr.mxu0 0.0
    %673 = vmatpush1.msra.mxu0 0.0
    %674 = vmatprep.subr.mxu0 0.0
    %675 = vmatpush1.msra.mxu0 0.0
    %676 = vmatprep.subr.mxu0 0.0
    %677 = vmatpush1.msra.mxu0 0.0
    %678 = vmatprep.subr.mxu0 0.0
    %679 = vmatpush1.msra.mxu0 0.0
    %680 = vmatprep.subr.mxu0 0.0
    %681 = vmatpush1.msra.mxu0 0.0
    %682 = vmatprep.subr.mxu0 0.0
    %683 = vmatpush1.msra.mxu0 0.0
    %684 = vmatprep.subr.mxu0 0.0
    %685 = vmatpush1.msra.mxu0 0.0
    %686 = vmatprep.subr.mxu0 0.0
    %687 = vmatpush1.msra.mxu0 0.0
    %688 = vmatprep.subr.mxu0 0.0
    %689 = vmatpush1.msra.mxu0 0.0
    %690 = vmatprep.subr.mxu0 0.0
    %691 = vmatpush1.msra.mxu0 0.0
    %692 = vmatprep.subr.mxu0 0.0
    %693 = vmatpush1.msra.mxu0 0.0
    %694 = vmatprep.subr.mxu0 0.0
    %695 = vmatpush1.msra.mxu0 0.0
    %696 = vmatprep.mubr.f32.mxu0 0.0
    %697 = vmatmul.mubr.f32.gmra.mrb[0].mxu0 %v630
    %v698 = vpop.f32.mrb[0].mxu0
    %v699 = vadd.f32 0.0, %v698
    %v700 = vpop.f32.mrb[0].mxu0
    %v701 = vadd.f32 0.0, %v700
    %702 = vdwg.mxu0
    %v703 = vadd.f32 %v199, %v699
    %v704 = vxor.u32 %v703, 2147483648
    %v705 = vmul.f32 %v704, 1.442695
    %v706 = vpow.pop %v705
    %v707 = vadd.f32 %v706, 1.0
    %v708 = vrcp.pop %v707
    %v709 = vmul.f32 1.0, %v708
    %v710 = vadd.f32 %v701, %v226
    %v711 = vmul.f32 %v709, %v710
    %v712 = vadd.f32 %v201, %v711
    %v713 = vtanh.pop %v712
    %v714 = vsub.f32 %v628, %v713
    %716 = vrot.lane.b32.xlu0 %v714, 64
    %v717 = vpop.permute.xlu0 %716
    %v719 = vmul.f32 %v709, %v717
    %721 = vrot.lane.b32.xlu0 %v719, 64
    %v722 = vpop.permute.xlu0 %721
    %v724 = vadd.f32 %v713, %v722
    %v726 = vsel %vm244, %v724, 0
    %728 = vmatprep.subr.mxu0 %v229
    %729 = vmatpush1.msra.mxu0 %v228
    %730 = vmatprep.subr.mxu0 %v231
    %731 = vmatpush1.msra.mxu0 %v230
    %732 = vmatprep.subr.mxu0 %v233
    %733 = vmatpush1.msra.mxu0 %v232
    %734 = vmatprep.subr.mxu0 %v235
    %735 = vmatpush1.msra.mxu0 %v234
    %736 = vmatprep.subr.mxu0 %v237
    %737 = vmatpush1.msra.mxu0 %v236
    %738 = vmatprep.subr.mxu0 %v239
    %739 = vmatpush1.msra.mxu0 %v238
    %740 = vmatprep.subr.mxu0 %v241
    %741 = vmatpush1.msra.mxu0 %v240
    %742 = vmatprep.subr.mxu0 %v243
    %743 = vmatpush1.msra.mxu0 %v242
    %744 = vmatprep.subr.mxu0 0.0
    %745 = vmatpush1.msra.mxu0 0.0
    %746 = vmatprep.subr.mxu0 0.0
    %747 = vmatpush1.msra.mxu0 0.0
    %748 = vmatprep.subr.mxu0 0.0
    %749 = vmatpush1.msra.mxu0 0.0
    %750 = vmatprep.subr.mxu0 0.0
    %751 = vmatpush1.msra.mxu0 0.0
    %752 = vmatprep.subr.mxu0 0.0
    %753 = vmatpush1.msra.mxu0 0.0
    %754 = vmatprep.subr.mxu0 0.0
    %755 = vmatpush1.msra.mxu0 0.0
    %756 = vmatprep.subr.mxu0 0.0
    %757 = vmatpush1.msra.mxu0 0.0
    %758 = vmatprep.subr.mxu0 0.0
    %759 = vmatpush1.msra.mxu0 0.0
    %760 = vmatprep.subr.mxu0 0.0
    %761 = vmatpush1.msra.mxu0 0.0
    %762 = vmatprep.subr.mxu0 0.0
    %763 = vmatpush1.msra.mxu0 0.0
    %764 = vmatprep.subr.mxu0 0.0
    %765 = vmatpush1.msra.mxu0 0.0
    %766 = vmatprep.subr.mxu0 0.0
    %767 = vmatpush1.msra.mxu0 0.0
    %768 = vmatprep.subr.mxu0 0.0
    %769 = vmatpush1.msra.mxu0 0.0
    %770 = vmatprep.subr.mxu0 0.0
    %771 = vmatpush1.msra.mxu0 0.0
    %772 = vmatprep.subr.mxu0 0.0
    %773 = vmatpush1.msra.mxu0 0.0
    %774 = vmatprep.subr.mxu0 0.0
    %775 = vmatpush1.msra.mxu0 0.0
    %776 = vmatprep.subr.mxu0 0.0
    %777 = vmatpush1.msra.mxu0 0.0
    %778 = vmatprep.subr.mxu0 0.0
    %779 = vmatpush1.msra.mxu0 0.0
    %780 = vmatprep.subr.mxu0 0.0
    %781 = vmatpush1.msra.mxu0 0.0
    %782 = vmatprep.subr.mxu0 0.0
    %783 = vmatpush1.msra.mxu0 0.0
    %784 = vmatprep.subr.mxu0 0.0
    %785 = vmatpush1.msra.mxu0 0.0
    %786 = vmatprep.subr.mxu0 0.0
    %787 = vmatpush1.msra.mxu0 0.0
    %788 = vmatprep.subr.mxu0 0.0
    %789 = vmatpush1.msra.mxu0 0.0
    %790 = vmatprep.subr.mxu0 0.0
    %791 = vmatpush1.msra.mxu0 0.0
    %792 = vmatprep.mubr.f32.mxu0 0.0
    %793 = vmatmul.mubr.f32.gmra.mrb[0].mxu0 %v726
    %v794 = vpop.f32.mrb[0].mxu0
    %v795 = vadd.f32 0.0, %v794
    %v796 = vpop.f32.mrb[0].mxu0
    %v797 = vadd.f32 0.0, %v796
    %798 = vdwg.mxu0
    %v799 = vadd.f32 %v205, %v795
    %v800 = vxor.u32 %v799, 2147483648
    %v801 = vmul.f32 %v800, 1.442695
    %v802 = vpow.pop %v801
    %v803 = vadd.f32 %v802, 1.0
    %v804 = vrcp.pop %v803
    %v805 = vmul.f32 1.0, %v804
    %v806 = vadd.f32 %v797, %v226
    %v807 = vmul.f32 %v805, %v806
    %v808 = vadd.f32 %v207, %v807
    %v809 = vtanh.pop %v808
    %v810 = vsub.f32 %v724, %v809
    %812 = vrot.lane.b32.xlu0 %v810, 64
    %v813 = vpop.permute.xlu0 %812
    %v815 = vmul.f32 %v805, %v813
    %817 = vrot.lane.b32.xlu0 %v815, 64
    %v818 = vpop.permute.xlu0 %817
    %v820 = vadd.f32 %v809, %v818
    %v822 = vsel %vm244, %v820, 0
    %824 = vmatprep.subr.mxu0 %v229
    %825 = vmatpush1.msra.mxu0 %v228
    %826 = vmatprep.subr.mxu0 %v231
    %827 = vmatpush1.msra.mxu0 %v230
    %828 = vmatprep.subr.mxu0 %v233
    %829 = vmatpush1.msra.mxu0 %v232
    %830 = vmatprep.subr.mxu0 %v235
    %831 = vmatpush1.msra.mxu0 %v234
    %832 = vmatprep.subr.mxu0 %v237
    %833 = vmatpush1.msra.mxu0 %v236
    %834 = vmatprep.subr.mxu0 %v239
    %835 = vmatpush1.msra.mxu0 %v238
    %836 = vmatprep.subr.mxu0 %v241
    %837 = vmatpush1.msra.mxu0 %v240
    %838 = vmatprep.subr.mxu0 %v243
    %839 = vmatpush1.msra.mxu0 %v242
    %840 = vmatprep.subr.mxu0 0.0
    %841 = vmatpush1.msra.mxu0 0.0
    %842 = vmatprep.subr.mxu0 0.0
    %843 = vmatpush1.msra.mxu0 0.0
    %844 = vmatprep.subr.mxu0 0.0
    %845 = vmatpush1.msra.mxu0 0.0
    %846 = vmatprep.subr.mxu0 0.0
    %847 = vmatpush1.msra.mxu0 0.0
    %848 = vmatprep.subr.mxu0 0.0
    %849 = vmatpush1.msra.mxu0 0.0
    %850 = vmatprep.subr.mxu0 0.0
    %851 = vmatpush1.msra.mxu0 0.0
    %852 = vmatprep.subr.mxu0 0.0
    %853 = vmatpush1.msra.mxu0 0.0
    %854 = vmatprep.subr.mxu0 0.0
    %855 = vmatpush1.msra.mxu0 0.0
    %856 = vmatprep.subr.mxu0 0.0
    %857 = vmatpush1.msra.mxu0 0.0
    %858 = vmatprep.subr.mxu0 0.0
    %859 = vmatpush1.msra.mxu0 0.0
    %860 = vmatprep.subr.mxu0 0.0
    %861 = vmatpush1.msra.mxu0 0.0
    %862 = vmatprep.subr.mxu0 0.0
    %863 = vmatpush1.msra.mxu0 0.0
    %864 = vmatprep.subr.mxu0 0.0
    %865 = vmatpush1.msra.mxu0 0.0
    %866 = vmatprep.subr.mxu0 0.0
    %867 = vmatpush1.msra.mxu0 0.0
    %868 = vmatprep.subr.mxu0 0.0
    %869 = vmatpush1.msra.mxu0 0.0
    %870 = vmatprep.subr.mxu0 0.0
    %871 = vmatpush1.msra.mxu0 0.0
    %872 = vmatprep.subr.mxu0 0.0
    %873 = vmatpush1.msra.mxu0 0.0
    %874 = vmatprep.subr.mxu0 0.0
    %875 = vmatpush1.msra.mxu0 0.0
    %876 = vmatprep.subr.mxu0 0.0
    %877 = vmatpush1.msra.mxu0 0.0
    %878 = vmatprep.subr.mxu0 0.0
    %879 = vmatpush1.msra.mxu0 0.0
    %880 = vmatprep.subr.mxu0 0.0
    %881 = vmatpush1.msra.mxu0 0.0
    %882 = vmatprep.subr.mxu0 0.0
    %883 = vmatpush1.msra.mxu0 0.0
    %884 = vmatprep.subr.mxu0 0.0
    %885 = vmatpush1.msra.mxu0 0.0
    %886 = vmatprep.subr.mxu0 0.0
    %887 = vmatpush1.msra.mxu0 0.0
    %888 = vmatprep.mubr.f32.mxu0 0.0
    %889 = vmatmul.mubr.f32.gmra.mrb[0].mxu0 %v822
    %v890 = vpop.f32.mrb[0].mxu0
    %v891 = vadd.f32 0.0, %v890
    %v892 = vpop.f32.mrb[0].mxu0
    %v893 = vadd.f32 0.0, %v892
    %894 = vdwg.mxu0
    %v895 = vadd.f32 %v211, %v891
    %v896 = vxor.u32 %v895, 2147483648
    %v897 = vmul.f32 %v896, 1.442695
    %v898 = vpow.pop %v897
    %v899 = vadd.f32 %v898, 1.0
    %v900 = vrcp.pop %v899
    %v901 = vmul.f32 1.0, %v900
    %v902 = vadd.f32 %v893, %v226
    %v903 = vmul.f32 %v901, %v902
    %v904 = vadd.f32 %v213, %v903
    %v905 = vtanh.pop %v904
    %v906 = vsub.f32 %v820, %v905
    %908 = vrot.lane.b32.xlu0 %v906, 64
    %v909 = vpop.permute.xlu0 %908
    %v911 = vmul.f32 %v901, %v909
    %913 = vrot.lane.b32.xlu0 %v911, 64
    %v914 = vpop.permute.xlu0 %913
    %v916 = vadd.f32 %v905, %v914
    %v918 = vsel %vm244, %v916, 0
    %920 = vmatprep.subr.mxu0 %v229
    %921 = vmatpush1.msra.mxu0 %v228
    %922 = vmatprep.subr.mxu0 %v231
    %923 = vmatpush1.msra.mxu0 %v230
    %924 = vmatprep.subr.mxu0 %v233
    %925 = vmatpush1.msra.mxu0 %v232
    %926 = vmatprep.subr.mxu0 %v235
    %927 = vmatpush1.msra.mxu0 %v234
    %928 = vmatprep.subr.mxu0 %v237
    %929 = vmatpush1.msra.mxu0 %v236
    %930 = vmatprep.subr.mxu0 %v239
    %931 = vmatpush1.msra.mxu0 %v238
    %932 = vmatprep.subr.mxu0 %v241
    %933 = vmatpush1.msra.mxu0 %v240
    %934 = vmatprep.subr.mxu0 %v243
    %935 = vmatpush1.msra.mxu0 %v242
    %936 = vmatprep.subr.mxu0 0.0
    %937 = vmatpush1.msra.mxu0 0.0
    %938 = vmatprep.subr.mxu0 0.0
    %939 = vmatpush1.msra.mxu0 0.0
    %940 = vmatprep.subr.mxu0 0.0
    %941 = vmatpush1.msra.mxu0 0.0
    %942 = vmatprep.subr.mxu0 0.0
    %943 = vmatpush1.msra.mxu0 0.0
    %944 = vmatprep.subr.mxu0 0.0
    %945 = vmatpush1.msra.mxu0 0.0
    %946 = vmatprep.subr.mxu0 0.0
    %947 = vmatpush1.msra.mxu0 0.0
    %948 = vmatprep.subr.mxu0 0.0
    %949 = vmatpush1.msra.mxu0 0.0
    %950 = vmatprep.subr.mxu0 0.0
    %951 = vmatpush1.msra.mxu0 0.0
    %952 = vmatprep.subr.mxu0 0.0
    %953 = vmatpush1.msra.mxu0 0.0
    %954 = vmatprep.subr.mxu0 0.0
    %955 = vmatpush1.msra.mxu0 0.0
    %956 = vmatprep.subr.mxu0 0.0
    %957 = vmatpush1.msra.mxu0 0.0
    %958 = vmatprep.subr.mxu0 0.0
    %959 = vmatpush1.msra.mxu0 0.0
    %960 = vmatprep.subr.mxu0 0.0
    %961 = vmatpush1.msra.mxu0 0.0
    %962 = vmatprep.subr.mxu0 0.0
    %963 = vmatpush1.msra.mxu0 0.0
    %964 = vmatprep.subr.mxu0 0.0
    %965 = vmatpush1.msra.mxu0 0.0
    %966 = vmatprep.subr.mxu0 0.0
    %967 = vmatpush1.msra.mxu0 0.0
    %968 = vmatprep.subr.mxu0 0.0
    %969 = vmatpush1.msra.mxu0 0.0
    %970 = vmatprep.subr.mxu0 0.0
    %971 = vmatpush1.msra.mxu0 0.0
    %972 = vmatprep.subr.mxu0 0.0
    %973 = vmatpush1.msra.mxu0 0.0
    %974 = vmatprep.subr.mxu0 0.0
    %975 = vmatpush1.msra.mxu0 0.0
    %976 = vmatprep.subr.mxu0 0.0
    %977 = vmatpush1.msra.mxu0 0.0
    %978 = vmatprep.subr.mxu0 0.0
    %979 = vmatpush1.msra.mxu0 0.0
    %980 = vmatprep.subr.mxu0 0.0
    %981 = vmatpush1.msra.mxu0 0.0
    %982 = vmatprep.subr.mxu0 0.0
    %983 = vmatpush1.msra.mxu0 0.0
    %984 = vmatprep.mubr.f32.mxu0 0.0
    %985 = vmatmul.mubr.f32.gmra.mrb[0].mxu0 %v918
    %v986 = vpop.f32.mrb[0].mxu0
    %v987 = vadd.f32 0.0, %v986
    %v988 = vpop.f32.mrb[0].mxu0
    %v989 = vadd.f32 0.0, %v988
    %990 = vdwg.mxu0
    %v991 = vadd.f32 %v217, %v987
    %v992 = vxor.u32 %v991, 2147483648
    %v993 = vmul.f32 %v992, 1.442695
    %v994 = vpow.pop %v993
    %v995 = vadd.f32 %v994, 1.0
    %v996 = vrcp.pop %v995
    %v997 = vmul.f32 1.0, %v996
    %v998 = vadd.f32 %v989, %v226
    %v999 = vmul.f32 %v997, %v998
    %v1000 = vadd.f32 %v219, %v999
    %v1001 = vtanh.pop %v1000
    %v1002 = vsub.f32 %v916, %v1001
    %1004 = vrot.lane.b32.xlu0 %v1002, 64
    %v1005 = vpop.permute.xlu0 %1004
    %v1007 = vmul.f32 %v997, %v1005
    %1009 = vrot.lane.b32.xlu0 %v1007, 64
    %v1010 = vpop.permute.xlu0 %1009
    %v1012 = vadd.f32 %v1001, %v1010
    %v1013 = vld [vmem:[#allocation5] sm:$0xff]
    %v1014 = vld [vmem:[#allocation5 + $0x8] sm:$0xff]
    %v1015 = vld [vmem:[#allocation5 + $0x10] sm:$0xff]
    %v1016 = vld [vmem:[#allocation5 + $0x18] sm:$0xff]
    %v1017 = vld [vmem:[#allocation5 + $0x20] sm:$0xff]
    %v1018 = vld [vmem:[#allocation5 + $0x28] sm:$0xff]
    %v1019 = vld [vmem:[#allocation5 + $0x30] sm:$0xff]
    %v1020 = vld [vmem:[#allocation5 + $0x38] sm:$0xff]
    %v1021 = vld [vmem:[%s6] sm:$0x1]
    %v1023 = vlaneseq
    %v1024 = vshrl.u32 %v1023, 7
    %v1025 = vsub.s32 0, %v1024
    %v1026 = vrot.slane %v1021, %v1025
    %v1029 = vsel %vm244, %v1012, 0
    %1031 = vmatprep.subr.mxu0 0.0
    %1032 = vmatpush1.msra.mxu0 %v1013
    %1033 = vmatprep.subr.mxu0 0.0
    %1034 = vmatpush1.msra.mxu0 %v1014
    %1035 = vmatprep.subr.mxu0 0.0
    %1036 = vmatpush1.msra.mxu0 %v1015
    %1037 = vmatprep.subr.mxu0 0.0
    %1038 = vmatpush1.msra.mxu0 %v1016
    %1039 = vmatprep.subr.mxu0 0.0
    %1040 = vmatpush1.msra.mxu0 %v1017
    %1041 = vmatprep.subr.mxu0 0.0
    %1042 = vmatpush1.msra.mxu0 %v1018
    %1043 = vmatprep.subr.mxu0 0.0
    %1044 = vmatpush1.msra.mxu0 %v1019
    %1045 = vmatprep.subr.mxu0 0.0
    %1046 = vmatpush1.msra.mxu0 %v1020
    %1047 = vmatprep.subr.mxu0 0.0
    %1048 = vmatpush1.msra.mxu0 0.0
    %1049 = vmatprep.subr.mxu0 0.0
    %1050 = vmatpush1.msra.mxu0 0.0
    %1051 = vmatprep.subr.mxu0 0.0
    %1052 = vmatpush1.msra.mxu0 0.0
    %1053 = vmatprep.subr.mxu0 0.0
    %1054 = vmatpush1.msra.mxu0 0.0
    %1055 = vmatprep.subr.mxu0 0.0
    %1056 = vmatpush1.msra.mxu0 0.0
    %1057 = vmatprep.subr.mxu0 0.0
    %1058 = vmatpush1.msra.mxu0 0.0
    %1059 = vmatprep.subr.mxu0 0.0
    %1060 = vmatpush1.msra.mxu0 0.0
    %1061 = vmatprep.subr.mxu0 0.0
    %1062 = vmatpush1.msra.mxu0 0.0
    %1063 = vmatprep.subr.mxu0 0.0
    %1064 = vmatpush1.msra.mxu0 0.0
    %1065 = vmatprep.subr.mxu0 0.0
    %1066 = vmatpush1.msra.mxu0 0.0
    %1067 = vmatprep.subr.mxu0 0.0
    %1068 = vmatpush1.msra.mxu0 0.0
    %1069 = vmatprep.subr.mxu0 0.0
    %1070 = vmatpush1.msra.mxu0 0.0
    %1071 = vmatprep.subr.mxu0 0.0
    %1072 = vmatpush1.msra.mxu0 0.0
    %1073 = vmatprep.subr.mxu0 0.0
    %1074 = vmatpush1.msra.mxu0 0.0
    %1075 = vmatprep.subr.mxu0 0.0
    %1076 = vmatpush1.msra.mxu0 0.0
    %1077 = vmatprep.subr.mxu0 0.0
    %1078 = vmatpush1.msra.mxu0 0.0
    %1079 = vmatprep.subr.mxu0 0.0
    %1080 = vmatpush1.msra.mxu0 0.0
    %1081 = vmatprep.subr.mxu0 0.0
    %1082 = vmatpush1.msra.mxu0 0.0
    %1083 = vmatprep.subr.mxu0 0.0
    %1084 = vmatpush1.msra.mxu0 0.0
    %1085 = vmatprep.subr.mxu0 0.0
    %1086 = vmatpush1.msra.mxu0 0.0
    %1087 = vmatprep.subr.mxu0 0.0
    %1088 = vmatpush1.msra.mxu0 0.0
    %1089 = vmatprep.subr.mxu0 0.0
    %1090 = vmatpush1.msra.mxu0 0.0
    %1091 = vmatprep.subr.mxu0 0.0
    %1092 = vmatpush1.msra.mxu0 0.0
    %1093 = vmatprep.subr.mxu0 0.0
    %1094 = vmatpush1.msra.mxu0 0.0
    %1095 = vmatprep.mubr.f32.mxu0 0.0
    %1096 = vmatmul.mubr.f32.gmra.mrb[0].mxu0 %v1029
    %v1097 = vpop.f32.mrb[0].mxu0
    %v1098 = vadd.f32 %v1026, %v1097
    %v1099 = vpop.f32.mrb[0].mxu0
    %1100 = vdwg.mxu0
    %1101 = vmax.xlane.f32.xlu0 %v1098
    %v1102 = vpop.xlane.xlu0 %1101
    %v1103 = vsub.f32 %v1098, %v1102
    %v1104 = vmul.f32 %v1103, 1.442695
    %v1105 = vpow.pop %v1104
    %1106 = vadd.xlane.f32.xlu0 %v1105
    %v1107 = vpop.xlane.xlu0 %1106
    %v1108 = vrcp.pop %v1107
    %v1109 = vmul.f32 %v1105, %v1108
    %1110 = vst [vmem:[#allocation7] sm:$0xff] %v1109
    // Predicated region
    $region38: #{tpu_custom_call.1} parent=1 // pred_check
      _
    $region39: #{tpu_custom_call.1} parent=1 // pred_check_branch
      %1112 = sbr.rel (0) target = $region41
    $region40: #{tpu_custom_call.1} parent=1 // pred_region
      %s1114 = ssub.s32 128, 128
      %1115 = vsyncadd [#allocation4], %s1114
      %s1117 = sshll.u32 [#allocation7], 4
      %s1118 = int_to_ptr.vmem [resolvable:$true] %s1117
      %1120 = dma.vmem_to_hbm [thread:$0]  %s1118, 128, %s7, [#allocation4]
    $region41: #{tpu_custom_call.1} parent=1 // pred_fallthru
      _
    // Predicated region
    $region42: #{tpu_custom_call.1} parent=1 // pred_check
      _
    $region43: #{tpu_custom_call.1} parent=1 // pred_check_branch
      %1122 = sbr.rel (0) target = $region45
    $region44: #{tpu_custom_call.1} parent=1 // pred_region
      %1123 = dma.done [#allocation4], 128
    $region45: #{tpu_custom_call.1} parent=1 // pred_fallthru
      _
    %1124 = vsyncpa [#allocation3], 1
    %1125 = vsyncpa [#allocation6], 1
    %1126 = vsyncpa [#allocation4], 1

</llo_original>
